<compile_context>
chip_gen: v7x
topology: tpu7x:2x2x1
jax: 0.10.0
libtpu: 0.0.40
codegen_flags: <defaults>
</compile_context>

<pallas_src>
import functools

import jax
import jax.numpy as jnp
from jax import lax
from jax.experimental import pallas as pl
from jax.experimental.pallas import tpu as pltpu

CH_MID = 128   # hidden channel width of the block (fixed by the module)
BN_EPS = 1e-5


def _round_up(n, m):
  return ((n + m - 1) // m) * m


def _conv_block_kernel(x_ref, xh_ref, w1_ref, b1_ref, w3_ref, b3_ref,
                       w5_ref, b5_ref, o_ref, *, tl, seq_len):
  """One (batch, L-tile) block per grid step.

  x_ref : (1, TL, Cin)   bf16 input rows of this tile (NLC layout)
  xh_ref: (1, 1, 8, Cin) bf16 halo rows: row 0 = x just before the tile,
                         row 1 = x just after the tile, rest zero.
  w1_ref: (Cin, 128)     bf16 1x1 conv #1 (BN folded)
  b1_ref: (1, 128)       f32
  w3_ref: (128, 384)     bf16 fused 3-tap conv: cols [0:128)=tap l-1,
                         [128:256)=tap l, [256:384)=tap l+1
  b3_ref: (1, 128)       f32
  w5_ref: (128, 128)     bf16 1x1 conv #3 (BN folded, Cout zero-padded to 128)
  b5_ref: (1, 128)       f32 (zero-padded)
  o_ref : (1, TL, 128)   f32 output tile (lane-dense store)
  """
  t = pl.program_id(1)
  rows = lax.broadcasted_iota(jnp.int32, (tl, 1), 0)            # (TL, 1)

  # ---- stage 1: 1x1 conv + BN + ReLU (channel matmul) ----
  x = x_ref[0]                                                  # (TL, Cin) bf16
  h1 = jnp.dot(x, w1_ref[...], preferred_element_type=jnp.float32)
  h1 = jnp.maximum(h1 + b1_ref[...], 0.0)                       # (TL, 128) f32
  # Zero rows beyond the true sequence length (handles the padded tail of the
  # last tile AND the zero-padding semantics at the right sequence edge).
  valid = (rows + t * tl) < seq_len
  h1 = jnp.where(valid, h1, 0.0).astype(jnp.bfloat16)

  # ---- stage 2: k=3, pad=1 conv as ONE wide matmul + post-roll fixup ----
  g = jnp.dot(h1, w3_ref[...], preferred_element_type=jnp.float32)  # (TL, 384)
  g0 = g[:, :CH_MID]              # contribution via tap "l-1" (to output l+1)
  g1 = g[:, CH_MID:2 * CH_MID]    # contribution via tap "l"
  g2 = g[:, 2 * CH_MID:]          # contribution via tap "l+1" (to output l-1)

  # Halo rows (the single row before / after this tile) go through stage 1 +
  # the fused stage-2 weights as well; they are zeroed when the neighbour is a
  # zero-padding position or out of range.
  xh = xh_ref[0, 0]                                             # (8, Cin) bf16
  h1h = jnp.dot(xh, w1_ref[...], preferred_element_type=jnp.float32)
  h1h = jnp.maximum(h1h + b1_ref[...], 0.0)                     # (8, 128)
  hrow = lax.broadcasted_iota(jnp.int32, (8, 1), 0)
  prev_ok = t > 0                          # there is a real row before tile
  next_ok = (t + 1) * tl < seq_len         # there is a real row after tile
  keep = ((hrow == 0) & prev_ok) | ((hrow == 1) & next_ok)
  h1h = jnp.where(keep, h1h, 0.0).astype(jnp.bfloat16)
  gh = jnp.dot(h1h, w3_ref[...], preferred_element_type=jnp.float32)  # (8, 384)
  g0_prev = gh[0:1, :CH_MID]               # (1, 128) tap "l-1" from halo row
  g2_next = gh[1:2, 2 * CH_MID:]           # (1, 128) tap "l+1" from halo row

  # Row-rolls on the *results* (non-negative shifts only), then fix the single
  # wrapped boundary row of each with the halo contribution.
  left = pltpu.roll(g0, shift=1, axis=0)            # left[l]  = g0[l-1]
  left = jnp.where(rows == 0, g0_prev, left)
  right = pltpu.roll(g2, shift=tl - 1, axis=0)      # right[l] = g2[l+1]
  right = jnp.where(rows == tl - 1, g2_next, right)

  h2 = jnp.maximum(left + g1 + right + b3_ref[...], 0.0)        # (TL, 128)
  h2 = h2.astype(jnp.bfloat16)

  # ---- stage 3: 1x1 conv + BN + ReLU (Cout padded to 128 lanes) ----
  h3 = jnp.dot(h2, w5_ref[...], preferred_element_type=jnp.float32)
  o_ref[0] = jnp.maximum(h3 + b5_ref[...], 0.0).astype(o_ref.dtype)


def conv_block_33_pallas(x_nlc, w1, b1, w3cat, b3, w5p, b5p, tile_l=None):
  """x_nlc: (B, L, Cin) f32.  Returns (B, Lp, 128) f32 (caller slices)."""
  B, L, Cin = x_nlc.shape

  if tile_l is None:
    tile_l = 512
  tl = max(8, _round_up(min(tile_l, _round_up(L, 8)), 8))
  Lp = _round_up(L, tl)
  nT = Lp // tl

  xb = x_nlc.astype(jnp.bfloat16)
  x_pad = jnp.pad(xb, ((0, 0), (0, Lp - L), (0, 0)))

  # Halo rows for the 3-tap conv across tile boundaries:
  #   x_halo[b, t, 0] = x[b, t*tl - 1]   (row just before tile t; zero for t=0)
  #   x_halo[b, t, 1] = x[b, (t+1)*tl]   (row just after tile t; zero for last)
  x_halo = jnp.zeros((B, nT, 8, Cin), jnp.bfloat16)
  if nT > 1:
    prev_rows = x_pad[:, tl - 1::tl, :][:, :nT - 1, :]   # (B, nT-1, Cin)
    next_rows = x_pad[:, tl::tl, :]                      # (B, nT-1, Cin)
    x_halo = x_halo.at[:, 1:, 0, :].set(prev_rows)
    x_halo = x_halo.at[:, :nT - 1, 1, :].set(next_rows)

  w1b = w1.astype(jnp.bfloat16)
  w3b = w3cat.astype(jnp.bfloat16)
  w5b = w5p.astype(jnp.bfloat16)

  kernel = functools.partial(_conv_block_kernel, tl=tl, seq_len=L)

  flops = 2 * B * Lp * (Cin * CH_MID + CH_MID * 3 * CH_MID + CH_MID * CH_MID)
  bytes_acc = int(x_pad.size * 2 + x_halo.size * 2 + B * Lp * CH_MID * 4
                  + (w1b.size + w3b.size + w5b.size) * 2
                  + (b1.size + b3.size + b5p.size) * 4)

  grid_spec = pltpu.PrefetchScalarGridSpec(
      num_scalar_prefetch=0,
      grid=(B, nT),
      in_specs=[
          pl.BlockSpec((1, tl, Cin), lambda b, t: (b, t, 0)),
          pl.BlockSpec((1, 1, 8, Cin), lambda b, t: (b, t, 0, 0)),
          pl.BlockSpec((Cin, CH_MID), lambda b, t: (0, 0)),
          pl.BlockSpec((1, CH_MID), lambda b, t: (0, 0)),
          pl.BlockSpec((CH_MID, 3 * CH_MID), lambda b, t: (0, 0)),
          pl.BlockSpec((1, CH_MID), lambda b, t: (0, 0)),
          pl.BlockSpec((CH_MID, CH_MID), lambda b, t: (0, 0)),
          pl.BlockSpec((1, CH_MID), lambda b, t: (0, 0)),
      ],
      out_specs=pl.BlockSpec((1, tl, CH_MID), lambda b, t: (b, t, 0)),
  )

  return pl.pallas_call(
      kernel,
      out_shape=jax.ShapeDtypeStruct((B, Lp, CH_MID), jnp.float32),
      grid_spec=grid_spec,
      compiler_params=pltpu.CompilerParams(
          dimension_semantics=("parallel", "parallel"),
          vmem_limit_bytes=32 * 1024 * 1024),
      cost_estimate=pl.CostEstimate(
          flops=flops, transcendentals=0, bytes_accessed=bytes_acc),
  )(x_pad, x_halo, w1b, b1, w3b, b3, w5b, b5p)


# ---------------------------------------------------------------------------
# Parameter construction (deterministic, mirrors the PyTorch __init__) and
# BatchNorm folding (inference mode, default running stats).
# ---------------------------------------------------------------------------
def _kaiming_normal(key, shape, fan_in):
  # nn.init.kaiming_normal_(w, nonlinearity='relu'): std = sqrt(2 / fan_in)
  std = (2.0 / fan_in) ** 0.5
  return std * jax.random.normal(key, shape, dtype=jnp.float32)


def make_params(key, chans):
  ks = jax.random.split(key, 6)
  # PyTorch conv weight layout: (Cout, Cin, K)
  w1 = _kaiming_normal(ks[0], (CH_MID, chans, 1), fan_in=chans * 1)
  b1 = 0.01 * jax.random.normal(ks[1], (CH_MID,), dtype=jnp.float32)
  w3 = _kaiming_normal(ks[2], (CH_MID, CH_MID, 3), fan_in=CH_MID * 3)
  b3 = 0.01 * jax.random.normal(ks[3], (CH_MID,), dtype=jnp.float32)
  w5 = _kaiming_normal(ks[4], (chans, CH_MID, 1), fan_in=CH_MID * 1)
  b5 = 0.01 * jax.random.normal(ks[5], (chans,), dtype=jnp.float32)

  def bn_default(c):
    # gamma=1, beta=0, running_mean=0, running_var=1 (module init)
    return (jnp.ones((c,), jnp.float32), jnp.zeros((c,), jnp.float32),
            jnp.zeros((c,), jnp.float32), jnp.ones((c,), jnp.float32))

  return dict(
      w1=w1, b1=b1, bn1=bn_default(CH_MID),
      w3=w3, b3=b3, bn2=bn_default(CH_MID),
      w5=w5, b5=b5, bn3=bn_default(chans),
  )


def fold_bn(w_oc_ic_k, b, bn):
  """Fold inference BatchNorm into conv: returns (W[k, Cin, Cout], bias[1, Cout])."""
  gamma, beta, mean, var = bn
  scale = gamma / jnp.sqrt(var + BN_EPS)                           # (Cout,)
  w = jnp.transpose(w_oc_ic_k, (2, 1, 0)) * scale[None, None, :]   # (K, Cin, Cout)
  bias = (b - mean) * scale + beta                                 # (Cout,)
  return w.astype(jnp.float32), bias[None, :].astype(jnp.float32)


def conv_block_33(x_ncl, params, tile_l=None):
  """Full module forward.  x_ncl: (B, C, L) like PyTorch; returns (B, C, L)."""
  w1, b1 = fold_bn(params["w1"], params["b1"], params["bn1"])  # (1,Cin,128)
  w3, b3 = fold_bn(params["w3"], params["b3"], params["bn2"])  # (3,128,128)
  w5, b5 = fold_bn(params["w5"], params["b5"], params["bn3"])  # (1,128,Cout)

  B, Cin, L = x_ncl.shape
  Cout = w5.shape[2]

  # Fuse the 3 taps into one (128, 384) weight; pad Cout -> 128 lanes.
  w3cat = jnp.concatenate([w3[0], w3[1], w3[2]], axis=1)            # (128, 384)
  w5p = jnp.zeros((CH_MID, CH_MID), jnp.float32).at[:, :Cout].set(w5[0])
  b5p = jnp.zeros((1, CH_MID), jnp.float32).at[:, :Cout].set(b5)

  x_nlc = jnp.transpose(x_ncl, (0, 2, 1)).astype(jnp.float32)       # NCL -> NLC
  out_nlc = conv_block_33_pallas(x_nlc, w1[0], b1, w3cat, b3, w5p, b5p,
                                 tile_l=tile_l)
  return jnp.transpose(out_nlc[:, :L, :Cout], (0, 2, 1))            # NLC -> NCL


# ---------------------------------------------------------------------------
# Pure-JAX reference (same folded weights).  matmul_dtype=bfloat16 mimics the
# kernel's MXU input rounding for a tight structural check; float32 is the
# exact module semantics for a looser fidelity check.
# ---------------------------------------------------------------------------
def conv_block_33_ref(x_ncl, params, matmul_dtype=jnp.float32):
  w1, b1 = fold_bn(params["w1"], params["b1"], params["bn1"])
  w3, b3 = fold_bn(params["w3"], params["b3"], params["bn2"])
  w5, b5 = fold_bn(params["w5"], params["b5"], params["bn3"])

  def mm(a, w):
    return jnp.einsum("blc,cd->bld", a.astype(matmul_dtype),
                      w.astype(matmul_dtype),
                      preferred_element_type=jnp.float32)

  x = jnp.transpose(x_ncl, (0, 2, 1)).astype(jnp.float32)           # (B, L, Cin)
  h1 = jax.nn.relu(mm(x, w1[0]) + b1)                               # (B, L, 128)
  hp = jnp.pad(h1, ((0, 0), (1, 1), (0, 0)))                        # zero pad L
  h2 = jax.nn.relu(mm(hp[:, :-2], w3[0]) + mm(hp[:, 1:-1], w3[1]) +
                   mm(hp[:, 2:], w3[2]) + b3)
  h3 = jax.nn.relu(mm(h2, w5[0]) + b5)                              # (B, L, Cout)
  return jnp.transpose(h3, (0, 2, 1))


if __name__ == "__main__":
  key = jax.random.PRNGKey(0)
  configs = [
      dict(B=2, chans=4, L=16, tile_l=None),  # single L tile
      dict(B=2, chans=4, L=16, tile_l=8),     # two L tiles (exercises halos)
      dict(B=2, chans=64, L=20, tile_l=8),    # L not a multiple of the tile
  ]
  for i, cfg in enumerate(configs):
    kx, kp, key = jax.random.split(key, 3)
    x = jax.random.normal(kx, (cfg["B"], cfg["chans"], cfg["L"]),
                          dtype=jnp.float32)                        # NCL
    params = make_params(kp, cfg["chans"])

    out = jax.block_until_ready(conv_block_33(x, params, tile_l=cfg["tile_l"]))
    ref_bf16 = jax.block_until_ready(
        conv_block_33_ref(x, params, matmul_dtype=jnp.bfloat16))
    ref_f32 = jax.block_until_ready(conv_block_33_ref(x, params))

    assert out.shape == (cfg["B"], cfg["chans"], cfg["L"]), (i, out.shape)
    assert jnp.allclose(out, ref_bf16, atol=1e-2, rtol=1e-2), \
        (i, float(jnp.max(jnp.abs(out - ref_bf16))))
    assert jnp.allclose(out, ref_f32, atol=2.5e-1, rtol=1e-1), \
        (i, float(jnp.max(jnp.abs(out - ref_f32))))
  print("KERNEL_OK")
</pallas_src>

<mosaic_0001>
module attributes {stable_mosaic.version = 11 : i64} {
  func.func @_conv_block_kernel(%arg0: i32, %arg1: i32, %arg2: memref<1x16x4xbf16, #tpu.memory_space<vmem>>, %arg3: memref<1x1x8x4xbf16, #tpu.memory_space<vmem>>, %arg4: memref<4x128xbf16, #tpu.memory_space<vmem>>, %arg5: memref<1x128xf32, #tpu.memory_space<vmem>>, %arg6: memref<128x384xbf16, #tpu.memory_space<vmem>>, %arg7: memref<1x128xf32, #tpu.memory_space<vmem>>, %arg8: memref<128x128xbf16, #tpu.memory_space<vmem>>, %arg9: memref<1x128xf32, #tpu.memory_space<vmem>>, %arg10: memref<1x16x128xf32, #tpu.memory_space<vmem>>) attributes {dimension_semantics = [#tpu.dimension_semantics<parallel>, #tpu.dimension_semantics<parallel>], iteration_bounds = array<i64: 2, 1>, scalar_prefetch = 0 : i64, scratch_operands = 0 : i64, tpu.core_type = #tpu.core_type<tc>, window_params = [{transform_indices = @transform_0, window_bounds = array<i64: 1, 16, 4>}, {transform_indices = @transform_1, window_bounds = array<i64: 1, 1, 8, 4>}, {pipeline_mode = #tpu.pipeline_mode<synchronous>, transform_indices = @transform_2, window_bounds = array<i64: 4, 128>}, {pipeline_mode = #tpu.pipeline_mode<synchronous>, transform_indices = @transform_3, window_bounds = array<i64: 1, 128>}, {pipeline_mode = #tpu.pipeline_mode<synchronous>, transform_indices = @transform_4, window_bounds = array<i64: 128, 384>}, {pipeline_mode = #tpu.pipeline_mode<synchronous>, transform_indices = @transform_5, window_bounds = array<i64: 1, 128>}, {pipeline_mode = #tpu.pipeline_mode<synchronous>, transform_indices = @transform_6, window_bounds = array<i64: 128, 128>}, {pipeline_mode = #tpu.pipeline_mode<synchronous>, transform_indices = @transform_7, window_bounds = array<i64: 1, 128>}, {transform_indices = @transform_8, window_bounds = array<i64: 1, 16, 128>}]} {
    %0 = tpu.iota {dimensions = array<i32: 0>} : vector<16x1xi32>
    %c0 = arith.constant 0 : index
    %c0_0 = arith.constant 0 : index
    %c0_1 = arith.constant 0 : index
    %1 = vector.load %arg2[%c0, %c0_0, %c0_1] : memref<1x16x4xbf16, #tpu.memory_space<vmem>>, vector<1x16x4xbf16>
    %2 = vector.shape_cast %1 : vector<1x16x4xbf16> to vector<16x4xbf16>
    %c0_2 = arith.constant 0 : index
    %c0_3 = arith.constant 0 : index
    %3 = vector.load %arg4[%c0_2, %c0_3] : memref<4x128xbf16, #tpu.memory_space<vmem>>, vector<4x128xbf16>
    %cst = arith.constant dense<0.000000e+00> : vector<16x128xf32>
    %4 = tpu.matmul %2, %3, %cst {dimension_numbers = #tpu.dot_dimension_numbers<[1], [0], [0], [1], [0, 0, 1, 1], [], []>} : vector<16x4xbf16>, vector<4x128xbf16>, vector<16x128xf32> -> vector<16x128xf32>
    %c0_4 = arith.constant 0 : index
    %c0_5 = arith.constant 0 : index
    %5 = vector.load %arg5[%c0_4, %c0_5] : memref<1x128xf32, #tpu.memory_space<vmem>>, vector<1x128xf32>
    %6 = vector.broadcast %5 : vector<1x128xf32> to vector<16x128xf32>
    %7 = arith.addf %4, %6 : vector<16x128xf32>
    %cst_6 = arith.constant 0.000000e+00 : f32
    %8 = vector.broadcast %cst_6 : f32 to vector<16x128xf32>
    %9 = arith.maximumf %7, %8 : vector<16x128xf32>
    %c16_i32 = arith.constant 16 : i32
    %10 = arith.muli %arg1, %c16_i32 : i32
    %11 = vector.broadcast %10 : i32 to vector<16x1xi32>
    %12 = arith.addi %0, %11 : vector<16x1xi32>
    %c16_i32_7 = arith.constant 16 : i32
    %13 = vector.broadcast %c16_i32_7 : i32 to vector<16x1xi32>
    %14 = arith.cmpi slt, %12, %13 : vector<16x1xi32>
    %cst_8 = arith.constant 0.000000e+00 : f32
    %15 = vector.shape_cast %14 : vector<16x1xi1> to vector<16x1xi1>
    %16 = vector.broadcast %15 : vector<16x1xi1> to vector<16x128xi1>
    %17 = vector.broadcast %cst_8 : f32 to vector<16x128xf32>
    %18 = arith.select %16, %9, %17 : vector<16x128xi1>, vector<16x128xf32>
    %19 = arith.truncf %18 : vector<16x128xf32> to vector<16x128xbf16>
    %c0_9 = arith.constant 0 : index
    %c0_10 = arith.constant 0 : index
    %20 = vector.load %arg6[%c0_9, %c0_10] : memref<128x384xbf16, #tpu.memory_space<vmem>>, vector<128x384xbf16>
    %cst_11 = arith.constant dense<0.000000e+00> : vector<16x384xf32>
    %21 = tpu.matmul %19, %20, %cst_11 {dimension_numbers = #tpu.dot_dimension_numbers<[1], [0], [0], [1], [0, 0, 1, 1], [], []>} : vector<16x128xbf16>, vector<128x384xbf16>, vector<16x384xf32> -> vector<16x384xf32>
    %22 = vector.extract_strided_slice %21 {offsets = [0, 0], sizes = [16, 128], strides = [1, 1]} : vector<16x384xf32> to vector<16x128xf32>
    %23 = vector.extract_strided_slice %21 {offsets = [0, 128], sizes = [16, 128], strides = [1, 1]} : vector<16x384xf32> to vector<16x128xf32>
    %24 = vector.extract_strided_slice %21 {offsets = [0, 256], sizes = [16, 128], strides = [1, 1]} : vector<16x384xf32> to vector<16x128xf32>
    %c0_12 = arith.constant 0 : index
    %c0_13 = arith.constant 0 : index
    %c0_14 = arith.constant 0 : index
    %c0_15 = arith.constant 0 : index
    %25 = vector.load %arg3[%c0_12, %c0_13, %c0_14, %c0_15] : memref<1x1x8x4xbf16, #tpu.memory_space<vmem>>, vector<1x1x8x4xbf16>
    %26 = vector.shape_cast %25 : vector<1x1x8x4xbf16> to vector<8x4xbf16>
    %c0_16 = arith.constant 0 : index
    %c0_17 = arith.constant 0 : index
    %27 = vector.load %arg4[%c0_16, %c0_17] : memref<4x128xbf16, #tpu.memory_space<vmem>>, vector<4x128xbf16>
    %cst_18 = arith.constant dense<0.000000e+00> : vector<8x128xf32>
    %28 = tpu.matmul %26, %27, %cst_18 {dimension_numbers = #tpu.dot_dimension_numbers<[1], [0], [0], [1], [0, 0, 1, 1], [], []>} : vector<8x4xbf16>, vector<4x128xbf16>, vector<8x128xf32> -> vector<8x128xf32>
    %c0_19 = arith.constant 0 : index
    %c0_20 = arith.constant 0 : index
    %29 = vector.load %arg5[%c0_19, %c0_20] : memref<1x128xf32, #tpu.memory_space<vmem>>, vector<1x128xf32>
    %30 = vector.broadcast %29 : vector<1x128xf32> to vector<8x128xf32>
    %31 = arith.addf %28, %30 : vector<8x128xf32>
    %cst_21 = arith.constant 0.000000e+00 : f32
    %32 = vector.broadcast %cst_21 : f32 to vector<8x128xf32>
    %33 = arith.maximumf %31, %32 : vector<8x128xf32>
    %34 = tpu.iota {dimensions = array<i32: 0>} : vector<8x1xi32>
    %c0_i32 = arith.constant 0 : i32
    %35 = arith.cmpi sgt, %arg1, %c0_i32 : i32
    %c1_i32 = arith.constant 1 : i32
    %36 = arith.addi %arg1, %c1_i32 : i32
    %c16_i32_22 = arith.constant 16 : i32
    %37 = arith.muli %36, %c16_i32_22 : i32
    %c16_i32_23 = arith.constant 16 : i32
    %38 = arith.cmpi slt, %37, %c16_i32_23 : i32
    %c0_i32_24 = arith.constant 0 : i32
    %39 = vector.broadcast %c0_i32_24 : i32 to vector<8x1xi32>
    %40 = arith.cmpi eq, %34, %39 : vector<8x1xi32>
    %41 = vector.broadcast %35 : i1 to vector<8x1xi1>
    %42 = arith.andi %40, %41 : vector<8x1xi1>
    %c1_i32_25 = arith.constant 1 : i32
    %43 = vector.broadcast %c1_i32_25 : i32 to vector<8x1xi32>
    %44 = arith.cmpi eq, %34, %43 : vector<8x1xi32>
    %45 = vector.broadcast %38 : i1 to vector<8x1xi1>
    %46 = arith.andi %44, %45 : vector<8x1xi1>
    %47 = arith.ori %42, %46 : vector<8x1xi1>
    %cst_26 = arith.constant 0.000000e+00 : f32
    %48 = vector.shape_cast %47 : vector<8x1xi1> to vector<8x1xi1>
    %49 = vector.broadcast %48 : vector<8x1xi1> to vector<8x128xi1>
    %50 = vector.broadcast %cst_26 : f32 to vector<8x128xf32>
    %51 = arith.select %49, %33, %50 : vector<8x128xi1>, vector<8x128xf32>
    %52 = arith.truncf %51 : vector<8x128xf32> to vector<8x128xbf16>
    %c0_27 = arith.constant 0 : index
    %c0_28 = arith.constant 0 : index
    %53 = vector.load %arg6[%c0_27, %c0_28] : memref<128x384xbf16, #tpu.memory_space<vmem>>, vector<128x384xbf16>
    %cst_29 = arith.constant dense<0.000000e+00> : vector<8x384xf32>
    %54 = tpu.matmul %52, %53, %cst_29 {dimension_numbers = #tpu.dot_dimension_numbers<[1], [0], [0], [1], [0, 0, 1, 1], [], []>} : vector<8x128xbf16>, vector<128x384xbf16>, vector<8x384xf32> -> vector<8x384xf32>
    %55 = vector.extract_strided_slice %54 {offsets = [0, 0], sizes = [1, 128], strides = [1, 1]} : vector<8x384xf32> to vector<1x128xf32>
    %56 = vector.extract_strided_slice %54 {offsets = [1, 256], sizes = [1, 128], strides = [1, 1]} : vector<8x384xf32> to vector<1x128xf32>
    %c1_i32_30 = arith.constant 1 : i32
    %57 = tpu.dynamic_rotate %22 by %c1_i32_30 dim 0 : vector<16x128xf32>, i32 -> vector<16x128xf32>
    %c0_i32_31 = arith.constant 0 : i32
    %58 = vector.broadcast %c0_i32_31 : i32 to vector<16x1xi32>
    %59 = arith.cmpi eq, %0, %58 : vector<16x1xi32>
    %60 = vector.shape_cast %59 : vector<16x1xi1> to vector<16x1xi1>
    %61 = vector.broadcast %60 : vector<16x1xi1> to vector<16x128xi1>
    %62 = vector.shape_cast %55 : vector<1x128xf32> to vector<1x128xf32>
    %63 = vector.broadcast %62 : vector<1x128xf32> to vector<16x128xf32>
    %64 = arith.select %61, %63, %57 : vector<16x128xi1>, vector<16x128xf32>
    %c15_i32 = arith.constant 15 : i32
    %65 = tpu.dynamic_rotate %24 by %c15_i32 dim 0 : vector<16x128xf32>, i32 -> vector<16x128xf32>
    %c15_i32_32 = arith.constant 15 : i32
    %66 = vector.broadcast %c15_i32_32 : i32 to vector<16x1xi32>
    %67 = arith.cmpi eq, %0, %66 : vector<16x1xi32>
    %68 = vector.shape_cast %67 : vector<16x1xi1> to vector<16x1xi1>
    %69 = vector.broadcast %68 : vector<16x1xi1> to vector<16x128xi1>
    %70 = vector.shape_cast %56 : vector<1x128xf32> to vector<1x128xf32>
    %71 = vector.broadcast %70 : vector<1x128xf32> to vector<16x128xf32>
    %72 = arith.select %69, %71, %65 : vector<16x128xi1>, vector<16x128xf32>
    %73 = arith.addf %64, %23 : vector<16x128xf32>
    %74 = arith.addf %73, %72 : vector<16x128xf32>
    %c0_33 = arith.constant 0 : index
    %c0_34 = arith.constant 0 : index
    %75 = vector.load %arg7[%c0_33, %c0_34] : memref<1x128xf32, #tpu.memory_space<vmem>>, vector<1x128xf32>
    %76 = vector.broadcast %75 : vector<1x128xf32> to vector<16x128xf32>
    %77 = arith.addf %74, %76 : vector<16x128xf32>
    %cst_35 = arith.constant 0.000000e+00 : f32
    %78 = vector.broadcast %cst_35 : f32 to vector<16x128xf32>
    %79 = arith.maximumf %77, %78 : vector<16x128xf32>
    %80 = arith.truncf %79 : vector<16x128xf32> to vector<16x128xbf16>
    %c0_36 = arith.constant 0 : index
    %c0_37 = arith.constant 0 : index
    %81 = vector.load %arg8[%c0_36, %c0_37] : memref<128x128xbf16, #tpu.memory_space<vmem>>, vector<128x128xbf16>
    %cst_38 = arith.constant dense<0.000000e+00> : vector<16x128xf32>
    %82 = tpu.matmul %80, %81, %cst_38 {dimension_numbers = #tpu.dot_dimension_numbers<[1], [0], [0], [1], [0, 0, 1, 1], [], []>} : vector<16x128xbf16>, vector<128x128xbf16>, vector<16x128xf32> -> vector<16x128xf32>
    %c0_39 = arith.constant 0 : index
    %c0_40 = arith.constant 0 : index
    %83 = vector.load %arg9[%c0_39, %c0_40] : memref<1x128xf32, #tpu.memory_space<vmem>>, vector<1x128xf32>
    %84 = vector.broadcast %83 : vector<1x128xf32> to vector<16x128xf32>
    %85 = arith.addf %82, %84 : vector<16x128xf32>
    %cst_41 = arith.constant 0.000000e+00 : f32
    %86 = vector.broadcast %cst_41 : f32 to vector<16x128xf32>
    %87 = arith.maximumf %85, %86 : vector<16x128xf32>
    %c0_42 = arith.constant 0 : index
    %c0_43 = arith.constant 0 : index
    %c0_44 = arith.constant 0 : index
    %88 = vector.load %arg10[%c0_42, %c0_43, %c0_44] : memref<1x16x128xf32, #tpu.memory_space<vmem>>, vector<1x16x128xf32>
    %89 = vector.shape_cast %88 : vector<1x16x128xf32> to vector<16x128xf32>
    %90 = vector.shape_cast %87 : vector<16x128xf32> to vector<1x16x128xf32>
    tpu.vector_store %arg10[%c0_42, %c0_43, %c0_44], %90 {strides = array<i32>} : memref<1x16x128xf32, #tpu.memory_space<vmem>>, vector<1x16x128xf32>,
    return
  }
  func.func @transform_0(%arg0: i32, %arg1: i32) -> (i32, i32, i32) {
    %c0_i32 = arith.constant 0 : i32
    %c0_i32_0 = arith.constant 0 : i32
    return %arg0, %arg1, %c0_i32 : i32, i32, i32
  }
  func.func @transform_1(%arg0: i32, %arg1: i32) -> (i32, i32, i32, i32) {
    %c0_i32 = arith.constant 0 : i32
    %c0_i32_0 = arith.constant 0 : i32
    %c0_i32_1 = arith.constant 0 : i32
    return %arg0, %arg1, %c0_i32, %c0_i32_0 : i32, i32, i32, i32
  }
  func.func @transform_2(%arg0: i32, %arg1: i32) -> (i32, i32) {
    %c0_i32 = arith.constant 0 : i32
    %c0_i32_0 = arith.constant 0 : i32
    %c0_i32_1 = arith.constant 0 : i32
    return %c0_i32, %c0_i32_0 : i32, i32
  }
  func.func @transform_3(%arg0: i32, %arg1: i32) -> (i32, i32) {
    %c0_i32 = arith.constant 0 : i32
    %c0_i32_0 = arith.constant 0 : i32
    %c0_i32_1 = arith.constant 0 : i32
    return %c0_i32, %c0_i32_0 : i32, i32
  }
  func.func @transform_4(%arg0: i32, %arg1: i32) -> (i32, i32) {
    %c0_i32 = arith.constant 0 : i32
    %c0_i32_0 = arith.constant 0 : i32
    %c0_i32_1 = arith.constant 0 : i32
    return %c0_i32, %c0_i32_0 : i32, i32
  }
  func.func @transform_5(%arg0: i32, %arg1: i32) -> (i32, i32) {
    %c0_i32 = arith.constant 0 : i32
    %c0_i32_0 = arith.constant 0 : i32
    %c0_i32_1 = arith.constant 0 : i32
    return %c0_i32, %c0_i32_0 : i32, i32
  }
  func.func @transform_6(%arg0: i32, %arg1: i32) -> (i32, i32) {
    %c0_i32 = arith.constant 0 : i32
    %c0_i32_0 = arith.constant 0 : i32
    %c0_i32_1 = arith.constant 0 : i32
    return %c0_i32, %c0_i32_0 : i32, i32
  }
  func.func @transform_7(%arg0: i32, %arg1: i32) -> (i32, i32) {
    %c0_i32 = arith.constant 0 : i32
    %c0_i32_0 = arith.constant 0 : i32
    %c0_i32_1 = arith.constant 0 : i32
    return %c0_i32, %c0_i32_0 : i32, i32
  }
  func.func @transform_8(%arg0: i32, %arg1: i32) -> (i32, i32, i32) {
    %c0_i32 = arith.constant 0 : i32
    %c0_i32_0 = arith.constant 0 : i32
    return %arg0, %arg1, %c0_i32 : i32, i32, i32
  }
}

</mosaic_0001>

<llo_original>
// kernel: tpu_custom_call.1
$region0: #{tpu_custom_call.1}
  #allocation0 [shape = 'u32[]', space=smem, size = 0x4, offset = 0x4, fixed_abs, tag = 'smem constant byte address 0x4 - core index']
  #allocation1 [shape = 'u32[144,128]{1,0:T(1,128)}', space=vmem, size = 0x12000, scoped, tag = 'internal scratch']
  %s0 = inlined_call_operand.vmem [shape: bf16[2,16,4], index: 0, kind: input, shape index: {}]
  %s1 = inlined_call_operand.vmem [shape: bf16[2,1,8,4], index: 1, kind: input, shape index: {}]
  %s2 = inlined_call_operand.vmem [shape: bf16[4,128], index: 2, kind: input, shape index: {}]
  %s3 = inlined_call_operand.vmem [shape: f32[1,128], index: 3, kind: input, shape index: {}]
  %s4 = inlined_call_operand.hbm [shape: bf16[128,384], index: 4, kind: input, shape index: {}]
  %s5 = inlined_call_operand.vmem [shape: f32[1,128], index: 5, kind: input, shape index: {}]
  %s6 = inlined_call_operand.hbm [shape: bf16[128,128], index: 6, kind: input, shape index: {}]
  %s7 = inlined_call_operand.vmem [shape: f32[1,128], index: 7, kind: input, shape index: {}]
  %s8 = inlined_call_operand.hbm [shape: f32[2,16,128], index: 8, kind: output, shape index: {}]
  %s9 = sld [smem:[#allocation0]]
  $region73: #{tpu_custom_call.1} parent=0
    _
  %s11 = ssub.s32 1, %s9
  %s12 = scalar_select 0, %s11, %s9
  $region1: #{tpu_custom_call.1} parent=0
    #allocation2 [shape = 'u8[98304]{0}', space=vmem, size = 0x18000, scoped, tag = 'input window, operand 4, single buffered']
    #allocation3 [shape = 's32[2]{0}', space=sflag, size = 0x8, scoped, tag = 'scoped memory for tpu_custom_call.1']
    #allocation4 [shape = 's32[2]{0}', space=sflag, size = 0x8, scoped, tag = 'scoped memory for tpu_custom_call.1']
    #allocation5 [shape = 'u8[32768]{0}', space=vmem, size = 0x8000, scoped, tag = 'input window, operand 6, single buffered']
    #allocation6 [shape = 's32[1]{0}', space=sflag, size = 0x4, scoped, tag = 'scoped memory for tpu_custom_call.1']
    #allocation7 [shape = 'u8[16384]{0}', space=vmem, size = 0x4000, scoped, tag = 'output window, operand 0']
    %13 = vsyncpa [#allocation3], 0
    %14 = vsyncpa [#allocation6], 0
    %15 = vsyncpa [#allocation4], 0
    %s16 = scalar_lea.sflag [#allocation4], 1
    %17 = vsyncpa %s16, 0
    loop: start=0, step=1, limit=4
    $region2: #{tpu_custom_call.1} parent=1 // loop_pre_header
      _
    $region3: #{tpu_custom_call.1} parent=1 // loop_header
      %s19 = sphi 0, %s23
      %p20 = scmp.ge.s32.totalorder %s19, 4
      %s26 = sphi 0, %s38
      %s27 = sphi 0, %s34
      %s28 = sphi 0, %s26
      %s29 = sphi 0, %s27
      %s30 = sphi 0, %s28
      %s31 = sphi 0, %s29
      %s43 = sphi 0, %s45
      %s46 = sphi 0, %s43
      %s47 = sphi 0, %s46
      %s63 = sphi 0, %s47
      %s71 = sphi 0, %s73
      %s74 = sphi 0, %s71
      %s75 = sphi 0, %s74
      %s91 = sphi 0, %s75
      %s95 = sphi 0, %s95
      %s97 = sphi 0, %s95
      %s98 = sphi 0, %s97
      %s112 = sphi 0, %s98
      %s116 = sphi 0, %s116
      %s118 = sphi 0, %s116
      %s119 = sphi 0, %s118
      %s133 = sphi 0, %s119
      %s137 = sphi 0, %s137
      %s139 = sphi 0, %s137
      %s140 = sphi 0, %s139
      %s154 = sphi 0, %s140
      %s158 = sphi 0, %s158
      %s160 = sphi 0, %s158
      %s161 = sphi 0, %s160
      %s175 = sphi 0, %s161
      %s179 = sphi 0, %s179
      %s181 = sphi 0, %s179
      %s182 = sphi 0, %s181
      %s196 = sphi 0, %s182
      %s200 = sphi 0, %s200
      %s202 = sphi 0, %s200
      %s203 = sphi 0, %s202
      %s217 = sphi 0, %s203
      %s225 = sphi 0, %s227
      %s228 = sphi 0, %s225
      %s229 = sphi 0, %s228
      %s245 = sphi 0, %s229
    $region4: #{tpu_custom_call.1} parent=1 // loop_header_branch
      %22 = sbr.rel (%p20) target = $region8
    $region5: #{tpu_custom_call.1} parent=1 // loop_body
      %s24 = ssub.s32 %s19, 1
      %s25 = ssub.s32 %s19, 2
      %s32 = sadd.s32 1, %s27
      %p33 = scmp.ge.s32.totalorder %s32, 1
      %s34 = scalar_select %p33, 0, %s32
      %s35 = sadd.s32 1, %s26
      %s36 = scalar_select %p33, %s35, %s26
      %p37 = scmp.ge.s32.totalorder %s36, 2
      %s38 = scalar_select %p37, 0, %s36
      %s39 = ssub.s32 %s26, %s38
      %s40 = ssub.s32 %s27, %s34
      %s41 = sor.u32 %s39, %s40
      %p42 = scmp.eq.s32.totalorder %s41, 0
      %s44 = sadd.s32 %s43, 1
      %s45 = scalar_select %p42, %s43, %s44
      %p48 = pneg %p42
      %p49 = scmp.eq.s32.totalorder %s19, 1
      %p50 = por %p48, %p49
      %p51 = scmp.ne.s32.totalorder %s43, %s46
      %p52 = scmp.eq.s32.totalorder %s19, 0
      %p53 = por %p51, %p52
      %p54 = scmp.ne.s32.totalorder %s43, %s46
      %p55 = scmp.eq.s32.totalorder %s24, 1
      %p56 = por %p54, %p55
      %p57 = scmp.ne.s32.totalorder %s46, %s47
      %p58 = scmp.eq.s32.totalorder %s24, 0
      %p59 = por %p57, %p58
      %p60 = scmp.ne.s32.totalorder %s46, %s47
      %p61 = scmp.eq.s32.totalorder %s25, 1
      %p62 = por %p60, %p61
      %p64 = scmp.ne.s32.totalorder %s47, %s63
      %p65 = scmp.eq.s32.totalorder %s25, 0
      %p66 = por %p64, %p65
      %s67 = ssub.s32 %s26, %s38
      %s68 = ssub.s32 %s27, %s34
      %s69 = sor.u32 %s67, %s68
      %p70 = scmp.eq.s32.totalorder %s69, 0
      %s72 = sadd.s32 %s71, 1
      %s73 = scalar_select %p70, %s71, %s72
      %p76 = pneg %p70
      %p77 = scmp.eq.s32.totalorder %s19, 1
      %p78 = por %p76, %p77
      %p79 = scmp.ne.s32.totalorder %s71, %s74
      %p80 = scmp.eq.s32.totalorder %s19, 0
      %p81 = por %p79, %p80
      %p82 = scmp.ne.s32.totalorder %s71, %s74
      %p83 = scmp.eq.s32.totalorder %s24, 1
      %p84 = por %p82, %p83
      %p85 = scmp.ne.s32.totalorder %s74, %s75
      %p86 = scmp.eq.s32.totalorder %s24, 0
      %p87 = por %p85, %p86
      %p88 = scmp.ne.s32.totalorder %s74, %s75
      %p89 = scmp.eq.s32.totalorder %s25, 1
      %p90 = por %p88, %p89
      %p92 = scmp.ne.s32.totalorder %s75, %s91
      %p93 = scmp.eq.s32.totalorder %s25, 0
      %p94 = por %p92, %p93
      %s96 = sadd.s32 %s95, 1
      %p99 = scmp.eq.s32.totalorder %s19, 1
      %p100 = scmp.ne.s32.totalorder %s95, %s97
      %p101 = scmp.eq.s32.totalorder %s19, 0
      %p102 = por %p100, %p101
      %p103 = scmp.ne.s32.totalorder %s95, %s97
      %p104 = scmp.eq.s32.totalorder %s24, 1
      %p105 = por %p103, %p104
      %p106 = scmp.ne.s32.totalorder %s97, %s98
      %p107 = scmp.eq.s32.totalorder %s24, 0
      %p108 = por %p106, %p107
      %p109 = scmp.ne.s32.totalorder %s97, %s98
      %p110 = scmp.eq.s32.totalorder %s25, 1
      %p111 = por %p109, %p110
      %p113 = scmp.ne.s32.totalorder %s98, %s112
      %p114 = scmp.eq.s32.totalorder %s25, 0
      %p115 = por %p113, %p114
      %s117 = sadd.s32 %s116, 1
      %p120 = scmp.eq.s32.totalorder %s19, 1
      %p121 = scmp.ne.s32.totalorder %s116, %s118
      %p122 = scmp.eq.s32.totalorder %s19, 0
      %p123 = por %p121, %p122
      %p124 = scmp.ne.s32.totalorder %s116, %s118
      %p125 = scmp.eq.s32.totalorder %s24, 1
      %p126 = por %p124, %p125
      %p127 = scmp.ne.s32.totalorder %s118, %s119
      %p128 = scmp.eq.s32.totalorder %s24, 0
      %p129 = por %p127, %p128
      %p130 = scmp.ne.s32.totalorder %s118, %s119
      %p131 = scmp.eq.s32.totalorder %s25, 1
      %p132 = por %p130, %p131
      %p134 = scmp.ne.s32.totalorder %s119, %s133
      %p135 = scmp.eq.s32.totalorder %s25, 0
      %p136 = por %p134, %p135
      %s138 = sadd.s32 %s137, 1
      %p141 = scmp.eq.s32.totalorder %s19, 1
      %p142 = scmp.ne.s32.totalorder %s137, %s139
      %p143 = scmp.eq.s32.totalorder %s19, 0
      %p144 = por %p142, %p143
      %p145 = scmp.ne.s32.totalorder %s137, %s139
      %p146 = scmp.eq.s32.totalorder %s24, 1
      %p147 = por %p145, %p146
      %p148 = scmp.ne.s32.totalorder %s139, %s140
      %p149 = scmp.eq.s32.totalorder %s24, 0
      %p150 = por %p148, %p149
      %p151 = scmp.ne.s32.totalorder %s139, %s140
      %p152 = scmp.eq.s32.totalorder %s25, 1
      %p153 = por %p151, %p152
      %p155 = scmp.ne.s32.totalorder %s140, %s154
      %p156 = scmp.eq.s32.totalorder %s25, 0
      %p157 = por %p155, %p156
      %s159 = sadd.s32 %s158, 1
      %p162 = scmp.eq.s32.totalorder %s19, 1
      %p163 = scmp.ne.s32.totalorder %s158, %s160
      %p164 = scmp.eq.s32.totalorder %s19, 0
      %p165 = por %p163, %p164
      %p166 = scmp.ne.s32.totalorder %s158, %s160
      %p167 = scmp.eq.s32.totalorder %s24, 1
      %p168 = por %p166, %p167
      %p169 = scmp.ne.s32.totalorder %s160, %s161
      %p170 = scmp.eq.s32.totalorder %s24, 0
      %p171 = por %p169, %p170
      %p172 = scmp.ne.s32.totalorder %s160, %s161
      %p173 = scmp.eq.s32.totalorder %s25, 1
      %p174 = por %p172, %p173
      %p176 = scmp.ne.s32.totalorder %s161, %s175
      %p177 = scmp.eq.s32.totalorder %s25, 0
      %p178 = por %p176, %p177
      %s180 = sadd.s32 %s179, 1
      %p183 = scmp.eq.s32.totalorder %s19, 1
      %p184 = scmp.ne.s32.totalorder %s179, %s181
      %p185 = scmp.eq.s32.totalorder %s19, 0
      %p186 = por %p184, %p185
      %p187 = scmp.ne.s32.totalorder %s179, %s181
      %p188 = scmp.eq.s32.totalorder %s24, 1
      %p189 = por %p187, %p188
      %p190 = scmp.ne.s32.totalorder %s181, %s182
      %p191 = scmp.eq.s32.totalorder %s24, 0
      %p192 = por %p190, %p191
      %p193 = scmp.ne.s32.totalorder %s181, %s182
      %p194 = scmp.eq.s32.totalorder %s25, 1
      %p195 = por %p193, %p194
      %p197 = scmp.ne.s32.totalorder %s182, %s196
      %p198 = scmp.eq.s32.totalorder %s25, 0
      %p199 = por %p197, %p198
      %s201 = sadd.s32 %s200, 1
      %p204 = scmp.eq.s32.totalorder %s19, 1
      %p205 = scmp.ne.s32.totalorder %s200, %s202
      %p206 = scmp.eq.s32.totalorder %s19, 0
      %p207 = por %p205, %p206
      %p208 = scmp.ne.s32.totalorder %s200, %s202
      %p209 = scmp.eq.s32.totalorder %s24, 1
      %p210 = por %p208, %p209
      %p211 = scmp.ne.s32.totalorder %s202, %s203
      %p212 = scmp.eq.s32.totalorder %s24, 0
      %p213 = por %p211, %p212
      %p214 = scmp.ne.s32.totalorder %s202, %s203
      %p215 = scmp.eq.s32.totalorder %s25, 1
      %p216 = por %p214, %p215
      %p218 = scmp.ne.s32.totalorder %s203, %s217
      %p219 = scmp.eq.s32.totalorder %s25, 0
      %p220 = por %p218, %p219
      %s221 = ssub.s32 %s26, %s38
      %s222 = ssub.s32 %s27, %s34
      %s223 = sor.u32 %s221, %s222
      %p224 = scmp.eq.s32.totalorder %s223, 0
      %s226 = sadd.s32 %s225, 1
      %s227 = scalar_select %p224, %s225, %s226
      %p230 = pneg %p224
      %p231 = scmp.eq.s32.totalorder %s19, 1
      %p232 = por %p230, %p231
      %p233 = scmp.ne.s32.totalorder %s225, %s228
      %p234 = scmp.eq.s32.totalorder %s19, 0
      %p235 = por %p233, %p234
      %p236 = scmp.ne.s32.totalorder %s225, %s228
      %p237 = scmp.eq.s32.totalorder %s24, 1
      %p238 = por %p236, %p237
      %p239 = scmp.ne.s32.totalorder %s228, %s229
      %p240 = scmp.eq.s32.totalorder %s24, 0
      %p241 = por %p239, %p240
      %p242 = scmp.ne.s32.totalorder %s228, %s229
      %p243 = scmp.eq.s32.totalorder %s25, 1
      %p244 = por %p242, %p243
      %p246 = scmp.ne.s32.totalorder %s229, %s245
      %p247 = scmp.eq.s32.totalorder %s25, 0
      %p248 = por %p246, %p247
      %p249 = scmp.le.s32.totalorder 1, %s19
      %p250 = scmp.lt.s32.totalorder %s19, 3
      %p251 = pnand %p249, %p250
      %p252 = pneg %p251
      // Predicated region
      $region9: #{tpu_custom_call.1} parent=5 // pred_check
        _
      $region10: #{tpu_custom_call.1} parent=5 // pred_check_branch
        %254 = sbr.rel (%p251) target = $region12
      $region11: #{tpu_custom_call.1} parent=5 // pred_region
        %s255 = ssub.s32 %s19, 1
        // Predicated region
        $region13: #{tpu_custom_call.1} parent=11 // pred_check
          %p256 = pneg %p108
        $region14: #{tpu_custom_call.1} parent=11 // pred_check_branch
          %258 = sbr.rel (%p256) target = $region16
        $region15: #{tpu_custom_call.1} parent=11 // pred_region
          _
        $region16: #{tpu_custom_call.1} parent=11 // pred_fallthru
          _
        // Predicated region
        $region17: #{tpu_custom_call.1} parent=11 // pred_check
          %p259 = pneg %p129
        $region18: #{tpu_custom_call.1} parent=11 // pred_check_branch
          %261 = sbr.rel (%p259) target = $region20
        $region19: #{tpu_custom_call.1} parent=11 // pred_region
          _
        $region20: #{tpu_custom_call.1} parent=11 // pred_fallthru
          _
        // Predicated region
        $region21: #{tpu_custom_call.1} parent=11 // pred_check
          %p262 = pneg %p150
        $region22: #{tpu_custom_call.1} parent=11 // pred_check_branch
          %264 = sbr.rel (%p262) target = $region24
        $region23: #{tpu_custom_call.1} parent=11 // pred_region
          %s266 = ssub.s32 3072, 3072
          %267 = vsyncadd [#allocation3], %s266
          %s268 = sshll.u32 [#allocation2], 4
          %s269 = int_to_ptr.vmem [resolvable:$true] %s268
          %274 = dma.hbm_to_vmem [thread:$0]  %s4, 3072, %s269, [#allocation3], 192, 192, 12
        $region24: #{tpu_custom_call.1} parent=11 // pred_fallthru
          _
        // Predicated region
        $region25: #{tpu_custom_call.1} parent=11 // pred_check
          %p275 = pneg %p171
        $region26: #{tpu_custom_call.1} parent=11 // pred_check_branch
          %277 = sbr.rel (%p275) target = $region28
        $region27: #{tpu_custom_call.1} parent=11 // pred_region
          _
        $region28: #{tpu_custom_call.1} parent=11 // pred_fallthru
          _
        // Predicated region
        $region29: #{tpu_custom_call.1} parent=11 // pred_check
          %p278 = pneg %p192
        $region30: #{tpu_custom_call.1} parent=11 // pred_check_branch
          %280 = sbr.rel (%p278) target = $region32
        $region31: #{tpu_custom_call.1} parent=11 // pred_region
          %s282 = ssub.s32 1024, 1024
          %283 = vsyncadd [#allocation6], %s282
          %s284 = sshll.u32 [#allocation5], 4
          %s285 = int_to_ptr.vmem [resolvable:$true] %s284
          %290 = dma.hbm_to_vmem [thread:$0]  %s6, 1024, %s285, [#allocation6], 64, 64, 4
        $region32: #{tpu_custom_call.1} parent=11 // pred_fallthru
          _
        // Predicated region
        $region33: #{tpu_custom_call.1} parent=11 // pred_check
          %p291 = pneg %p213
        $region34: #{tpu_custom_call.1} parent=11 // pred_check_branch
          %293 = sbr.rel (%p291) target = $region36
        $region35: #{tpu_custom_call.1} parent=11 // pred_region
          _
        $region36: #{tpu_custom_call.1} parent=11 // pred_fallthru
          _
      $region12: #{tpu_custom_call.1} parent=5 // pred_fallthru
        _
      %p294 = scmp.lt.s32.totalorder %s19, 2
      // Predicated region
      $region37: #{tpu_custom_call.1} parent=5 // pred_check
        %p295 = pneg %p294
      $region38: #{tpu_custom_call.1} parent=5 // pred_check_branch
        %297 = sbr.rel (%p295) target = $region40
      $region39: #{tpu_custom_call.1} parent=5 // pred_region
        // Predicated region
        $region41: #{tpu_custom_call.1} parent=39 // pred_check
          %p298 = pneg %p53
        $region42: #{tpu_custom_call.1} parent=39 // pred_check_branch
          %300 = sbr.rel (%p298) target = $region44
        $region43: #{tpu_custom_call.1} parent=39 // pred_region
          %s301 = smul.u32 2, %s27
          %p302 = scmp.lt.s32.totalorder %s26, 1
          %s303 = scalar_select %p302, %s26, 1
          %p304 = scmp.lt.s32.totalorder %s301, 1
          %s305 = scalar_select %p304, %s301, 1
          %s306 = smul.addr %s303, 2
          %s307 = sadd.s32 %s305, %s306
          %s308 = smul.addr %s307, 4
          %s309 = scalar_lea.vmem %s0, %s308
          %s310 = smul.u32 2, %s27
        $region44: #{tpu_custom_call.1} parent=39 // pred_fallthru
          _
        // Predicated region
        $region45: #{tpu_custom_call.1} parent=39 // pred_check
          %p311 = pneg %p81
        $region46: #{tpu_custom_call.1} parent=39 // pred_check_branch
          %313 = sbr.rel (%p311) target = $region48
        $region47: #{tpu_custom_call.1} parent=39 // pred_region
          %p314 = scmp.lt.s32.totalorder %s26, 1
          %s315 = scalar_select %p314, %s26, 1
          %p316 = scmp.lt.s32.totalorder %s27, 0
          %s317 = scalar_select %p316, %s27, 0
          %s318 = sadd.s32 %s317, %s315
          %s319 = smul.addr %s318, 4
          %s320 = scalar_lea.vmem %s1, %s319
        $region48: #{tpu_custom_call.1} parent=39 // pred_fallthru
          _
      $region40: #{tpu_custom_call.1} parent=5 // pred_fallthru
        _
      %p321 = scmp.le.s32.totalorder 1, %s19
      %p322 = scmp.lt.s32.totalorder %s19, 3
      %p323 = pnand %p321, %p322
      %p324 = pneg %p323
      // Predicated region
      $region49: #{tpu_custom_call.1} parent=5 // pred_check
        _
      $region50: #{tpu_custom_call.1} parent=5 // pred_check_branch
        %326 = sbr.rel (%p323) target = $region52
      $region51: #{tpu_custom_call.1} parent=5 // pred_region
        %s327 = ssub.s32 %s19, 1
        // Predicated region
        $region53: #{tpu_custom_call.1} parent=51 // pred_check
          %p328 = pneg %p150
        $region54: #{tpu_custom_call.1} parent=51 // pred_check_branch
          %330 = sbr.rel (%p328) target = $region56
        $region55: #{tpu_custom_call.1} parent=51 // pred_region
          %331 = dma.done [#allocation3], 3072
        $region56: #{tpu_custom_call.1} parent=51 // pred_fallthru
          _
        // Predicated region
        $region57: #{tpu_custom_call.1} parent=51 // pred_check
          %p332 = pneg %p192
        $region58: #{tpu_custom_call.1} parent=51 // pred_check_branch
          %334 = sbr.rel (%p332) target = $region60
        $region59: #{tpu_custom_call.1} parent=51 // pred_region
          %335 = dma.done [#allocation6], 1024
        $region60: #{tpu_custom_call.1} parent=51 // pred_fallthru
          _
        %s336 = smul.u32 2, %s29
        %p337 = scmp.lt.s32.totalorder %s28, 1
        %s338 = scalar_select %p337, %s28, 1
        %p339 = scmp.lt.s32.totalorder %s336, 1
        %s340 = scalar_select %p339, %s336, 1
        %s341 = smul.addr %s338, 2
        %s342 = sadd.s32 %s340, %s341
        %s343 = smul.addr %s342, 4
        %s344 = scalar_lea.vmem %s0, %s343
        %p345 = pneg %p59
        %p346 = pneg %p56
        %p347 = scmp.lt.s32.totalorder %s28, 1
        %s348 = scalar_select %p347, %s28, 1
        %p349 = scmp.lt.s32.totalorder %s29, 0
        %s350 = scalar_select %p349, %s29, 0
        %s351 = sadd.s32 %s350, %s348
        %s352 = smul.addr %s351, 4
        %s353 = scalar_lea.vmem %s1, %s352
        %p354 = pneg %p87
        %p355 = pneg %p84
        %p356 = pneg %p108
        %p357 = pneg %p105
        %p358 = pneg %p129
        %p359 = pneg %p126
        %p360 = pneg %p150
        %p361 = pneg %p147
        %p362 = pneg %p171
        %p363 = pneg %p168
        %p364 = pneg %p192
        %p365 = pneg %p189
        %p366 = pneg %p213
        %p367 = pneg %p210
        %p368 = pneg %p241
        %p369 = pneg %p238
        %s370 = sand.u32 %s228, 1
        %s371 = scalar_lea.sflag [#allocation4], %s370
        %s372 = sand.u32 %s228, 1
        %s373 = smul.addr %s372, 16
        %s374 = scalar_lea.vmem [#allocation7], %s373
        %s375 = smul.u32 2, %s29
        %p376 = scmp.lt.s32.totalorder %s28, 1
        %s377 = scalar_select %p376, %s28, 1
        %p378 = scmp.lt.s32.totalorder %s375, 1
        %s379 = scalar_select %p378, %s375, 1
        %s380 = smul.addr %s377, 2
        %s381 = sadd.s32 %s379, %s380
        %s382 = smul.addr %s381, 4
        %s383 = scalar_lea.vmem %s0, %s382
        %s384 = smul.u32 2, %s29
        %p385 = scmp.lt.s32.totalorder %s28, 1
        %s386 = scalar_select %p385, %s28, 1
        %p387 = scmp.lt.s32.totalorder %s29, 0
        %s388 = scalar_select %p387, %s29, 0
        %s389 = sadd.s32 %s388, %s386
        %s390 = smul.addr %s389, 4
        %s391 = scalar_lea.vmem %s1, %s390
        %s392 = smul.u32 2, %s29
        %v394 = vlaneseq
        %v395 = vshrl.u32 %v394, 7
        %v396 = vadd.s32 %v395, 8
        %v397 = vld [vmem:[%s383] sm:$0xf]
        %v398 = vld [vmem:[%s383 + $0x4] sm:$0xf]
        %v399 = vld [vmem:[%s2] sm:$0x3]
        %v400 = vld [vmem:[%s3] sm:$0x1]
        %v402 = vlaneseq
        %v403 = vshrl.u32 %v402, 7
        %v404 = vsub.s32 0, %v403
        %v405 = vrot.slane %v400, %v404
        %v409 = vunpack.c.l.b16 %v397
        %v410 = vunpack.c.l.b16 %v398
        %v411 = vpack.c.b16 %v410, %v409
        %vm412 = vcmask 31744
        %v414 = vsel %vm412, %v411, 0
        %vm416 = vcmask 1041408
        %v418 = vsel %vm416, %v399, 0
        %420 = vmatprep.subr.bf16.mxu0 0
        %421 = vmatpush1.bf16.msra.mxu0 %v418
        %422 = vmatprep.subr.bf16.mxu0 0
        %423 = vmatpush1.bf16.msra.mxu0 0
        %424 = vmatprep.subr.bf16.mxu0 0
        %425 = vmatpush1.bf16.msra.mxu0 0
        %426 = vmatprep.subr.bf16.mxu0 0
        %427 = vmatpush1.bf16.msra.mxu0 0
        %428 = vmatprep.subr.bf16.mxu0 0
        %429 = vmatpush1.bf16.msra.mxu0 0
        %430 = vmatprep.subr.bf16.mxu0 0
        %431 = vmatpush1.bf16.msra.mxu0 0
        %432 = vmatprep.subr.bf16.mxu0 0
        %433 = vmatpush1.bf16.msra.mxu0 0
        %434 = vmatprep.subr.bf16.mxu0 0
        %435 = vmatpush1.bf16.msra.mxu0 0
        %436 = vmatprep.subr.bf16.mxu0 0
        %437 = vmatpush1.bf16.msra.mxu0 0
        %438 = vmatprep.subr.bf16.mxu0 0
        %439 = vmatpush1.bf16.msra.mxu0 0
        %440 = vmatprep.subr.bf16.mxu0 0
        %441 = vmatpush1.bf16.msra.mxu0 0
        %442 = vmatprep.subr.bf16.mxu0 0
        %443 = vmatpush1.bf16.msra.mxu0 0
        %444 = vmatprep.subr.bf16.mxu0 0
        %445 = vmatpush1.bf16.msra.mxu0 0
        %446 = vmatprep.subr.bf16.mxu0 0
        %447 = vmatpush1.bf16.msra.mxu0 0
        %448 = vmatprep.subr.bf16.mxu0 0
        %449 = vmatpush1.bf16.msra.mxu0 0
        %450 = vmatprep.subr.bf16.mxu0 0
        %451 = vmatpush1.bf16.msra.mxu0 0
        %452 = vmatprep.mubr.bf16.mxu0 0
        %453 = vmatmul.mubr.bf16.gmra.mrb[0].mxu0 %v414
        %v454 = vpop.f32.mrb[0].mxu0
        %v455 = vadd.f32 %v405, %v454
        %v456 = vpop.f32.mrb[0].mxu0
        %v457 = vpop.f32.mrb[0].mxu0
        %v458 = vadd.f32 %v405, %v457
        %v459 = vpop.f32.mrb[0].mxu0
        %460 = vdwg.mxu0
        %v461 = vmax.f32 %v455, 0.0
        %v462 = vmax.f32 %v458, 0.0
        %s463 = smul.u32 %s29, 16
        %v464 = vstv %s463
        %v465 = vadd.s32 %v395, %v464
        %v466 = vadd.s32 %v396, %v464
        %vm467 = vcmp.lt.s32.totalorder %v465, 16
        %vm468 = vcmp.lt.s32.totalorder %v466, 16
        %v469 = vsel %vm467, 1, 0
        %v470 = vsel %vm468, 1, 0
        %vm471 = vcmp.eq.s32.totalorder %v469, 1
        %vm472 = vcmp.eq.s32.totalorder %v470, 1
        %v473 = vsel %vm471, %v461, 0.0
        %v474 = vsel %vm472, %v462, 0.0
        %v475 = vpack.c.bf16 %v474, %v473
        %v476 = vld [vmem:[#allocation2] sm:$0xff]
        %v477 = vld [vmem:[#allocation2 + $0x8] sm:$0xf]
        %v478 = vld [vmem:[#allocation2 + $0xc] sm:$0xff]
        %v479 = vld [vmem:[#allocation2 + $0x14] sm:$0xf]
        %v480 = vld [vmem:[#allocation2 + $0x18] sm:$0xff]
        %v481 = vld [vmem:[#allocation2 + $0x20] sm:$0xf]
        %v482 = vld [vmem:[#allocation2 + $0x24] sm:$0xff]
        %v483 = vld [vmem:[#allocation2 + $0x2c] sm:$0xf]
        %v484 = vld [vmem:[#allocation2 + $0x30] sm:$0xff]
        %v485 = vld [vmem:[#allocation2 + $0x38] sm:$0xf]
        %v486 = vld [vmem:[#allocation2 + $0x3c] sm:$0xff]
        %v487 = vld [vmem:[#allocation2 + $0x44] sm:$0xf]
        %v488 = vld [vmem:[#allocation2 + $0x48] sm:$0xff]
        %v489 = vld [vmem:[#allocation2 + $0x50] sm:$0xf]
        %v490 = vld [vmem:[#allocation2 + $0x54] sm:$0xff]
        %v491 = vld [vmem:[#allocation2 + $0x5c] sm:$0xf]
        %v492 = vld [vmem:[#allocation2 + $0x60] sm:$0xff]
        %v493 = vld [vmem:[#allocation2 + $0x68] sm:$0xf]
        %v494 = vld [vmem:[#allocation2 + $0x6c] sm:$0xff]
        %v495 = vld [vmem:[#allocation2 + $0x74] sm:$0xf]
        %v496 = vld [vmem:[#allocation2 + $0x78] sm:$0xff]
        %v497 = vld [vmem:[#allocation2 + $0x80] sm:$0xf]
        %v498 = vld [vmem:[#allocation2 + $0x84] sm:$0xff]
        %v499 = vld [vmem:[#allocation2 + $0x8c] sm:$0xf]
        %v500 = vld [vmem:[#allocation2 + $0x90] sm:$0xff]
        %v501 = vld [vmem:[#allocation2 + $0x98] sm:$0xf]
        %v502 = vld [vmem:[#allocation2 + $0x9c] sm:$0xff]
        %v503 = vld [vmem:[#allocation2 + $0xa4] sm:$0xf]
        %v504 = vld [vmem:[#allocation2 + $0xa8] sm:$0xff]
        %v505 = vld [vmem:[#allocation2 + $0xb0] sm:$0xf]
        %v506 = vld [vmem:[#allocation2 + $0xb4] sm:$0xff]
        %v507 = vld [vmem:[#allocation2 + $0xbc] sm:$0xf]
        %v540 = vunpack.c.l.b16 %v476
        %v541 = vunpack.c.h.b16 %v476
        %v542 = vunpack.c.l.b16 %v477
        %v543 = vunpack.c.l.b16 %v478
        %v544 = vunpack.c.h.b16 %v478
        %v545 = vunpack.c.l.b16 %v479
        %v546 = vunpack.c.l.b16 %v480
        %v547 = vunpack.c.h.b16 %v480
        %v548 = vunpack.c.l.b16 %v481
        %v549 = vunpack.c.l.b16 %v482
        %v550 = vunpack.c.h.b16 %v482
        %v551 = vunpack.c.l.b16 %v483
        %v552 = vunpack.c.l.b16 %v484
        %v553 = vunpack.c.h.b16 %v484
        %v554 = vunpack.c.l.b16 %v485
        %v555 = vunpack.c.l.b16 %v486
        %v556 = vunpack.c.h.b16 %v486
        %v557 = vunpack.c.l.b16 %v487
        %v558 = vunpack.c.l.b16 %v488
        %v559 = vunpack.c.h.b16 %v488
        %v560 = vunpack.c.l.b16 %v489
        %v561 = vunpack.c.l.b16 %v490
        %v562 = vunpack.c.h.b16 %v490
        %v563 = vunpack.c.l.b16 %v491
        %v564 = vunpack.c.l.b16 %v492
        %v565 = vunpack.c.h.b16 %v492
        %v566 = vunpack.c.l.b16 %v493
        %v567 = vunpack.c.l.b16 %v494
        %v568 = vunpack.c.h.b16 %v494
        %v569 = vunpack.c.l.b16 %v495
        %v570 = vunpack.c.l.b16 %v496
        %v571 = vunpack.c.h.b16 %v496
        %v572 = vunpack.c.l.b16 %v497
        %v573 = vunpack.c.l.b16 %v498
        %v574 = vunpack.c.h.b16 %v498
        %v575 = vunpack.c.l.b16 %v499
        %v576 = vunpack.c.l.b16 %v500
        %v577 = vunpack.c.h.b16 %v500
        %v578 = vunpack.c.l.b16 %v501
        %v579 = vunpack.c.l.b16 %v502
        %v580 = vunpack.c.h.b16 %v502
        %v581 = vunpack.c.l.b16 %v503
        %v582 = vunpack.c.l.b16 %v504
        %v583 = vunpack.c.h.b16 %v504
        %v584 = vunpack.c.l.b16 %v505
        %v585 = vunpack.c.l.b16 %v506
        %v586 = vunpack.c.h.b16 %v506
        %v587 = vunpack.c.l.b16 %v507
        %v588 = vpack.c.b16 %v543, %v540
        %v589 = vpack.c.b16 %v544, %v541
        %v590 = vpack.c.b16 %v545, %v542
        %v591 = vpack.c.b16 %v549, %v546
        %v592 = vpack.c.b16 %v550, %v547
        %v593 = vpack.c.b16 %v551, %v548
        %v594 = vpack.c.b16 %v555, %v552
        %v595 = vpack.c.b16 %v556, %v553
        %v596 = vpack.c.b16 %v557, %v554
        %v597 = vpack.c.b16 %v561, %v558
        %v598 = vpack.c.b16 %v562, %v559
        %v599 = vpack.c.b16 %v563, %v560
        %v600 = vpack.c.b16 %v567, %v564
        %v601 = vpack.c.b16 %v568, %v565
        %v602 = vpack.c.b16 %v569, %v566
        %v603 = vpack.c.b16 %v573, %v570
        %v604 = vpack.c.b16 %v574, %v571
        %v605 = vpack.c.b16 %v575, %v572
        %v606 = vpack.c.b16 %v579, %v576
        %v607 = vpack.c.b16 %v580, %v577
        %v608 = vpack.c.b16 %v581, %v578
        %v609 = vpack.c.b16 %v585, %v582
        %v610 = vpack.c.b16 %v586, %v583
        %v611 = vpack.c.b16 %v587, %v584
        %636 = vmatprep.subr.bf16.mxu0 %v589
        %637 = vmatpush1.bf16.msra.mxu0 %v588
        %638 = vmatprep.subr.bf16.mxu0 %v592
        %639 = vmatpush1.bf16.msra.mxu0 %v591
        %640 = vmatprep.subr.bf16.mxu0 %v595
        %641 = vmatpush1.bf16.msra.mxu0 %v594
        %642 = vmatprep.subr.bf16.mxu0 %v598
        %643 = vmatpush1.bf16.msra.mxu0 %v597
        %644 = vmatprep.subr.bf16.mxu0 %v601
        %645 = vmatpush1.bf16.msra.mxu0 %v600
        %646 = vmatprep.subr.bf16.mxu0 %v604
        %647 = vmatpush1.bf16.msra.mxu0 %v603
        %648 = vmatprep.subr.bf16.mxu0 %v607
        %649 = vmatpush1.bf16.msra.mxu0 %v606
        %650 = vmatprep.subr.bf16.mxu0 %v610
        %651 = vmatpush1.bf16.msra.mxu0 %v609
        %652 = vmatprep.subr.bf16.mxu0 0
        %653 = vmatpush1.bf16.msra.mxu0 0
        %654 = vmatprep.subr.bf16.mxu0 0
        %655 = vmatpush1.bf16.msra.mxu0 0
        %656 = vmatprep.subr.bf16.mxu0 0
        %657 = vmatpush1.bf16.msra.mxu0 0
        %658 = vmatprep.subr.bf16.mxu0 0
        %659 = vmatpush1.bf16.msra.mxu0 0
        %660 = vmatprep.subr.bf16.mxu0 0
        %661 = vmatpush1.bf16.msra.mxu0 0
        %662 = vmatprep.subr.bf16.mxu0 0
        %663 = vmatpush1.bf16.msra.mxu0 0
        %664 = vmatprep.subr.bf16.mxu0 0
        %665 = vmatpush1.bf16.msra.mxu0 0
        %666 = vmatprep.subr.bf16.mxu0 0
        %667 = vmatpush1.bf16.msra.mxu0 0
        %668 = vmatprep.mubr.bf16.mxu0 0
        %669 = vmatmul.mubr.bf16.gmra.mrb[0].mxu0 %v475
        %v670 = vpop.f32.mrb[0].mxu0
        %v671 = vadd.f32 0.0, %v670
        %v672 = vpop.f32.mrb[0].mxu0
        %v673 = vadd.f32 0.0, %v672
        %v674 = vpop.f32.mrb[0].mxu0
        %v675 = vadd.f32 0.0, %v674
        %v676 = vpop.f32.mrb[0].mxu0
        %v677 = vadd.f32 0.0, %v676
        %678 = vdwg.mxu0
        %679 = vmatprep.subr.bf16.mxu0 0
        %680 = vmatpush1.bf16.msra.mxu0 %v590
        %681 = vmatprep.subr.bf16.mxu0 0
        %682 = vmatpush1.bf16.msra.mxu0 %v593
        %683 = vmatprep.subr.bf16.mxu0 0
        %684 = vmatpush1.bf16.msra.mxu0 %v596
        %685 = vmatprep.subr.bf16.mxu0 0
        %686 = vmatpush1.bf16.msra.mxu0 %v599
        %687 = vmatprep.subr.bf16.mxu0 0
        %688 = vmatpush1.bf16.msra.mxu0 %v602
        %689 = vmatprep.subr.bf16.mxu0 0
        %690 = vmatpush1.bf16.msra.mxu0 %v605
        %691 = vmatprep.subr.bf16.mxu0 0
        %692 = vmatpush1.bf16.msra.mxu0 %v608
        %693 = vmatprep.subr.bf16.mxu0 0
        %694 = vmatpush1.bf16.msra.mxu0 %v611
        %695 = vmatprep.subr.bf16.mxu0 0
        %696 = vmatpush1.bf16.msra.mxu0 0
        %697 = vmatprep.subr.bf16.mxu0 0
        %698 = vmatpush1.bf16.msra.mxu0 0
        %699 = vmatprep.subr.bf16.mxu0 0
        %700 = vmatpush1.bf16.msra.mxu0 0
        %701 = vmatprep.subr.bf16.mxu0 0
        %702 = vmatpush1.bf16.msra.mxu0 0
        %703 = vmatprep.subr.bf16.mxu0 0
        %704 = vmatpush1.bf16.msra.mxu0 0
        %705 = vmatprep.subr.bf16.mxu0 0
        %706 = vmatpush1.bf16.msra.mxu0 0
        %707 = vmatprep.subr.bf16.mxu0 0
        %708 = vmatpush1.bf16.msra.mxu0 0
        %709 = vmatprep.subr.bf16.mxu0 0
        %710 = vmatpush1.bf16.msra.mxu0 0
        %711 = vmatprep.mubr.bf16.mxu0 0
        %712 = vmatmul.mubr.bf16.gmra.mrb[0].mxu0 %v475
        %v713 = vpop.f32.mrb[0].mxu0
        %v714 = vadd.f32 0.0, %v713
        %v715 = vpop.f32.mrb[0].mxu0
        %v716 = vpop.f32.mrb[0].mxu0
        %v717 = vadd.f32 0.0, %v716
        %v718 = vpop.f32.mrb[0].mxu0
        %719 = vdwg.mxu0
        %v720 = vld [vmem:[%s391] sm:$0xf]
        %v722 = vsel %vm412, %v720, 0
        %724 = vmatprep.subr.bf16.mxu0 0
        %725 = vmatpush1.bf16.msra.mxu0 %v418
        %726 = vmatprep.subr.bf16.mxu0 0
        %727 = vmatpush1.bf16.msra.mxu0 0
        %728 = vmatprep.subr.bf16.mxu0 0
        %729 = vmatpush1.bf16.msra.mxu0 0
        %730 = vmatprep.subr.bf16.mxu0 0
        %731 = vmatpush1.bf16.msra.mxu0 0
        %732 = vmatprep.subr.bf16.mxu0 0
        %733 = vmatpush1.bf16.msra.mxu0 0
        %734 = vmatprep.subr.bf16.mxu0 0
        %735 = vmatpush1.bf16.msra.mxu0 0
        %736 = vmatprep.subr.bf16.mxu0 0
        %737 = vmatpush1.bf16.msra.mxu0 0
        %738 = vmatprep.subr.bf16.mxu0 0
        %739 = vmatpush1.bf16.msra.mxu0 0
        %740 = vmatprep.subr.bf16.mxu0 0
        %741 = vmatpush1.bf16.msra.mxu0 0
        %742 = vmatprep.subr.bf16.mxu0 0
        %743 = vmatpush1.bf16.msra.mxu0 0
        %744 = vmatprep.subr.bf16.mxu0 0
        %745 = vmatpush1.bf16.msra.mxu0 0
        %746 = vmatprep.subr.bf16.mxu0 0
        %747 = vmatpush1.bf16.msra.mxu0 0
        %748 = vmatprep.subr.bf16.mxu0 0
        %749 = vmatpush1.bf16.msra.mxu0 0
        %750 = vmatprep.subr.bf16.mxu0 0
        %751 = vmatpush1.bf16.msra.mxu0 0
        %752 = vmatprep.subr.bf16.mxu0 0
        %753 = vmatpush1.bf16.msra.mxu0 0
        %754 = vmatprep.subr.bf16.mxu0 0
        %755 = vmatpush1.bf16.msra.mxu0 0
        %756 = vmatprep.mubr.bf16.mxu0 0
        %757 = vmatmul.mubr.bf16.gmra.mrb[0].mxu0 %v722
        %v758 = vpop.f32.mrb[0].mxu0
        %v759 = vadd.f32 %v405, %v758
        %v760 = vpop.f32.mrb[0].mxu0
        %v761 = vpop.f32.mrb[0].mxu0
        %v762 = vpop.f32.mrb[0].mxu0
        %763 = vdwg.mxu0
        %v764 = vmax.f32 %v759, 0.0
        %p765 = scmp.gt.s32.totalorder %s29, 0
        %s766 = sadd.s32 %s29, 1
        %s767 = smul.u32 %s766, 16
        %p768 = scmp.lt.s32.totalorder %s767, 16
        %vm769 = vcmp.eq.s32.totalorder %v395, 0
        %s770 = scalar_select %p765, 1, 0
        %v771 = vstv %s770
        %vm772 = vcmp.eq.s32.totalorder %v771, 1
        %vm773 = vmand %vm769, %vm772
        %vm774 = vcmp.eq.s32.totalorder %v395, 1
        %s775 = scalar_select %p768, 1, 0
        %v776 = vstv %s775
        %vm777 = vcmp.eq.s32.totalorder %v776, 1
        %vm778 = vmand %vm774, %vm777
        %vm779 = vmor %vm773, %vm778
        %v780 = vsel %vm779, 1, 0
        %vm781 = vcmp.eq.s32.totalorder %v780, 1
        %v782 = vsel %vm781, %v764, 0.0
        %v783 = vpack.c.bf16 %v782, %v782
        %784 = vmatprep.subr.bf16.mxu0 %v589
        %785 = vmatpush1.bf16.msra.mxu0 %v588
        %786 = vmatprep.subr.bf16.mxu0 %v592
        %787 = vmatpush1.bf16.msra.mxu0 %v591
        %788 = vmatprep.subr.bf16.mxu0 %v595
        %789 = vmatpush1.bf16.msra.mxu0 %v594
        %790 = vmatprep.subr.bf16.mxu0 %v598
        %791 = vmatpush1.bf16.msra.mxu0 %v597
        %792 = vmatprep.subr.bf16.mxu0 %v601
        %793 = vmatpush1.bf16.msra.mxu0 %v600
        %794 = vmatprep.subr.bf16.mxu0 %v604
        %795 = vmatpush1.bf16.msra.mxu0 %v603
        %796 = vmatprep.subr.bf16.mxu0 %v607
        %797 = vmatpush1.bf16.msra.mxu0 %v606
        %798 = vmatprep.subr.bf16.mxu0 %v610
        %799 = vmatpush1.bf16.msra.mxu0 %v609
        %800 = vmatprep.subr.bf16.mxu0 0
        %801 = vmatpush1.bf16.msra.mxu0 0
        %802 = vmatprep.subr.bf16.mxu0 0
        %803 = vmatpush1.bf16.msra.mxu0 0
        %804 = vmatprep.subr.bf16.mxu0 0
        %805 = vmatpush1.bf16.msra.mxu0 0
        %806 = vmatprep.subr.bf16.mxu0 0
        %807 = vmatpush1.bf16.msra.mxu0 0
        %808 = vmatprep.subr.bf16.mxu0 0
        %809 = vmatpush1.bf16.msra.mxu0 0
        %810 = vmatprep.subr.bf16.mxu0 0
        %811 = vmatpush1.bf16.msra.mxu0 0
        %812 = vmatprep.subr.bf16.mxu0 0
        %813 = vmatpush1.bf16.msra.mxu0 0
        %814 = vmatprep.subr.bf16.mxu0 0
        %815 = vmatpush1.bf16.msra.mxu0 0
        %816 = vmatprep.mubr.bf16.mxu0 0
        %817 = vmatmul.mubr.bf16.gmra.mrb[0].mxu0 %v783
        %v818 = vpop.f32.mrb[0].mxu0
        %v819 = vadd.f32 0.0, %v818
        %v820 = vpop.f32.mrb[0].mxu0
        %v821 = vpop.f32.mrb[0].mxu0
        %v822 = vpop.f32.mrb[0].mxu0
        %823 = vdwg.mxu0
        %824 = vmatprep.subr.bf16.mxu0 0
        %825 = vmatpush1.bf16.msra.mxu0 %v590
        %826 = vmatprep.subr.bf16.mxu0 0
        %827 = vmatpush1.bf16.msra.mxu0 %v593
        %828 = vmatprep.subr.bf16.mxu0 0
        %829 = vmatpush1.bf16.msra.mxu0 %v596
        %830 = vmatprep.subr.bf16.mxu0 0
        %831 = vmatpush1.bf16.msra.mxu0 %v599
        %832 = vmatprep.subr.bf16.mxu0 0
        %833 = vmatpush1.bf16.msra.mxu0 %v602
        %834 = vmatprep.subr.bf16.mxu0 0
        %835 = vmatpush1.bf16.msra.mxu0 %v605
        %836 = vmatprep.subr.bf16.mxu0 0
        %837 = vmatpush1.bf16.msra.mxu0 %v608
        %838 = vmatprep.subr.bf16.mxu0 0
        %839 = vmatpush1.bf16.msra.mxu0 %v611
        %840 = vmatprep.subr.bf16.mxu0 0
        %841 = vmatpush1.bf16.msra.mxu0 0
        %842 = vmatprep.subr.bf16.mxu0 0
        %843 = vmatpush1.bf16.msra.mxu0 0
        %844 = vmatprep.subr.bf16.mxu0 0
        %845 = vmatpush1.bf16.msra.mxu0 0
        %846 = vmatprep.subr.bf16.mxu0 0
        %847 = vmatpush1.bf16.msra.mxu0 0
        %848 = vmatprep.subr.bf16.mxu0 0
        %849 = vmatpush1.bf16.msra.mxu0 0
        %850 = vmatprep.subr.bf16.mxu0 0
        %851 = vmatpush1.bf16.msra.mxu0 0
        %852 = vmatprep.subr.bf16.mxu0 0
        %853 = vmatpush1.bf16.msra.mxu0 0
        %854 = vmatprep.subr.bf16.mxu0 0
        %855 = vmatpush1.bf16.msra.mxu0 0
        %856 = vmatprep.mubr.bf16.mxu0 0
        %857 = vmatmul.mubr.bf16.gmra.mrb[0].mxu0 %v783
        %v858 = vpop.f32.mrb[0].mxu0
        %v859 = vadd.f32 0.0, %v858
        %v860 = vpop.f32.mrb[0].mxu0
        %v861 = vpop.f32.mrb[0].mxu0
        %v862 = vpop.f32.mrb[0].mxu0
        %863 = vdwg.mxu0
        %v864 = vrot.slane %v671, 7
        %v865 = vrot.slane %v675, 7
        %vm866 = vcmp.lt.s32.totalorder %v395, 1
        %v867 = vsel %vm866, %v864, %v865
        %v868 = vsel %vm866, %v865, %v864
        %vm869 = vcmp.eq.s32.totalorder %v396, 0
        %v870 = vsel %vm769, 1, 0
        %v871 = vsel %vm869, 1, 0
        %vm872 = vcmp.eq.s32.totalorder %v870, 1
        %vm873 = vcmp.eq.s32.totalorder %v871, 1
        %v874 = vlaneseq
        %v875 = vshrl.u32 %v874, 7
        %v876 = vsub.s32 0, %v875
        %v877 = vrot.slane %v819, %v876
        %v878 = vsel %vm872, %v877, %v868
        %v879 = vsel %vm873, %v877, %v867
        %v880 = vrot.slane %v714, 1
        %v881 = vrot.slane %v717, 1
        %vm882 = vcmp.lt.s32.totalorder %v395, 7
        %v883 = vsel %vm882, %v880, %v881
        %v884 = vsel %vm882, %v881, %v880
        %vm885 = vcmp.eq.s32.totalorder %v395, 15
        %vm886 = vcmp.eq.s32.totalorder %v396, 15
        %v887 = vsel %vm885, 1, 0
        %v888 = vsel %vm886, 1, 0
        %vm889 = vcmp.eq.s32.totalorder %v887, 1
        %vm890 = vcmp.eq.s32.totalorder %v888, 1
        %v891 = vlaneseq
        %v892 = vshrl.u32 %v891, 7
        %v893 = vsub.s32 1, %v892
        %v894 = vrot.slane %v859, %v893
        %v895 = vsel %vm889, %v894, %v883
        %v896 = vsel %vm890, %v894, %v884
        %v897 = vadd.f32 %v878, %v673
        %v898 = vadd.f32 %v879, %v677
        %v899 = vadd.f32 %v897, %v895
        %v900 = vadd.f32 %v898, %v896
        %v901 = vld [vmem:[%s5] sm:$0x1]
        %v903 = vlaneseq
        %v904 = vshrl.u32 %v903, 7
        %v905 = vsub.s32 0, %v904
        %v906 = vrot.slane %v901, %v905
        %v908 = vadd.f32 %v899, %v906
        %v909 = vadd.f32 %v900, %v906
        %v910 = vmax.f32 %v908, 0.0
        %v911 = vmax.f32 %v909, 0.0
        %v912 = vpack.c.bf16 %v911, %v910
        %v913 = vld [vmem:[#allocation5] sm:$0xf]
        %v914 = vld [vmem:[#allocation5 + $0x4] sm:$0xf]
        %v915 = vld [vmem:[#allocation5 + $0x8] sm:$0xf]
        %v916 = vld [vmem:[#allocation5 + $0xc] sm:$0xf]
        %v917 = vld [vmem:[#allocation5 + $0x10] sm:$0xf]
        %v918 = vld [vmem:[#allocation5 + $0x14] sm:$0xf]
        %v919 = vld [vmem:[#allocation5 + $0x18] sm:$0xf]
        %v920 = vld [vmem:[#allocation5 + $0x1c] sm:$0xf]
        %v921 = vld [vmem:[#allocation5 + $0x20] sm:$0xf]
        %v922 = vld [vmem:[#allocation5 + $0x24] sm:$0xf]
        %v923 = vld [vmem:[#allocation5 + $0x28] sm:$0xf]
        %v924 = vld [vmem:[#allocation5 + $0x2c] sm:$0xf]
        %v925 = vld [vmem:[#allocation5 + $0x30] sm:$0xf]
        %v926 = vld [vmem:[#allocation5 + $0x34] sm:$0xf]
        %v927 = vld [vmem:[#allocation5 + $0x38] sm:$0xf]
        %v928 = vld [vmem:[#allocation5 + $0x3c] sm:$0xf]
        %v929 = vld [vmem:[%s7] sm:$0x1]
        %v931 = vlaneseq
        %v932 = vshrl.u32 %v931, 7
        %v933 = vsub.s32 0, %v932
        %v934 = vrot.slane %v929, %v933
        %v952 = vunpack.c.l.b16 %v913
        %v953 = vunpack.c.l.b16 %v914
        %v954 = vunpack.c.l.b16 %v915
        %v955 = vunpack.c.l.b16 %v916
        %v956 = vunpack.c.l.b16 %v917
        %v957 = vunpack.c.l.b16 %v918
        %v958 = vunpack.c.l.b16 %v919
        %v959 = vunpack.c.l.b16 %v920
        %v960 = vunpack.c.l.b16 %v921
        %v961 = vunpack.c.l.b16 %v922
        %v962 = vunpack.c.l.b16 %v923
        %v963 = vunpack.c.l.b16 %v924
        %v964 = vunpack.c.l.b16 %v925
        %v965 = vunpack.c.l.b16 %v926
        %v966 = vunpack.c.l.b16 %v927
        %v967 = vunpack.c.l.b16 %v928
        %v968 = vpack.c.b16 %v953, %v952
        %v969 = vpack.c.b16 %v955, %v954
        %v970 = vpack.c.b16 %v957, %v956
        %v971 = vpack.c.b16 %v959, %v958
        %v972 = vpack.c.b16 %v961, %v960
        %v973 = vpack.c.b16 %v963, %v962
        %v974 = vpack.c.b16 %v965, %v964
        %v975 = vpack.c.b16 %v967, %v966
        %984 = vmatprep.subr.bf16.mxu0 0
        %985 = vmatpush1.bf16.msra.mxu0 %v968
        %986 = vmatprep.subr.bf16.mxu0 0
        %987 = vmatpush1.bf16.msra.mxu0 %v969
        %988 = vmatprep.subr.bf16.mxu0 0
        %989 = vmatpush1.bf16.msra.mxu0 %v970
        %990 = vmatprep.subr.bf16.mxu0 0
        %991 = vmatpush1.bf16.msra.mxu0 %v971
        %992 = vmatprep.subr.bf16.mxu0 0
        %993 = vmatpush1.bf16.msra.mxu0 %v972
        %994 = vmatprep.subr.bf16.mxu0 0
        %995 = vmatpush1.bf16.msra.mxu0 %v973
        %996 = vmatprep.subr.bf16.mxu0 0
        %997 = vmatpush1.bf16.msra.mxu0 %v974
        %998 = vmatprep.subr.bf16.mxu0 0
        %999 = vmatpush1.bf16.msra.mxu0 %v975
        %1000 = vmatprep.subr.bf16.mxu0 0
        %1001 = vmatpush1.bf16.msra.mxu0 0
        %1002 = vmatprep.subr.bf16.mxu0 0
        %1003 = vmatpush1.bf16.msra.mxu0 0
        %1004 = vmatprep.subr.bf16.mxu0 0
        %1005 = vmatpush1.bf16.msra.mxu0 0
        %1006 = vmatprep.subr.bf16.mxu0 0
        %1007 = vmatpush1.bf16.msra.mxu0 0
        %1008 = vmatprep.subr.bf16.mxu0 0
        %1009 = vmatpush1.bf16.msra.mxu0 0
        %1010 = vmatprep.subr.bf16.mxu0 0
        %1011 = vmatpush1.bf16.msra.mxu0 0
        %1012 = vmatprep.subr.bf16.mxu0 0
        %1013 = vmatpush1.bf16.msra.mxu0 0
        %1014 = vmatprep.subr.bf16.mxu0 0
        %1015 = vmatpush1.bf16.msra.mxu0 0
        %1016 = vmatprep.mubr.bf16.mxu0 0
        %1017 = vmatmul.mubr.bf16.gmra.mrb[0].mxu0 %v912
        %v1018 = vpop.f32.mrb[0].mxu0
        %v1019 = vadd.f32 %v934, %v1018
        %v1020 = vpop.f32.mrb[0].mxu0
        %v1021 = vpop.f32.mrb[0].mxu0
        %v1022 = vadd.f32 %v934, %v1021
        %v1023 = vpop.f32.mrb[0].mxu0
        %1024 = vdwg.mxu0
        %v1025 = vmax.f32 %v1019, 0.0
        %v1026 = vmax.f32 %v1022, 0.0
        %1027 = vst [vmem:[%s374] sm:$0xff] %v1025
        %1028 = vst [vmem:[%s374 + $0x8] sm:$0xff] %v1026
        %s1029 = sand.u32 %s228, 1
        %s1030 = scalar_lea.sflag [#allocation4], %s1029
        %s1031 = sand.u32 %s228, 1
        %s1032 = smul.addr %s1031, 16
        %s1033 = scalar_lea.vmem [#allocation7], %s1032
        // Predicated region
        $region61: #{tpu_custom_call.1} parent=51 // pred_check
          %p1034 = pneg %p238
        $region62: #{tpu_custom_call.1} parent=51 // pred_check_branch
          %1036 = sbr.rel (%p1034) target = $region64
        $region63: #{tpu_custom_call.1} parent=51 // pred_region
          %s1037 = smul.u32 2, %s29
          %s1039 = ssub.s32 256, 256
          %1040 = vsyncadd %s1030, %s1039
          %s1041 = smul.addr %s28, 2
          %s1042 = sadd.s32 %s1037, %s1041
          %s1043 = smul.addr %s1042, 128
          %s1044 = scalar_lea.hbm %s8, %s1043
          %s1045 = sshll.u32 %s1033, 4
          %s1046 = int_to_ptr.vmem [resolvable:$true] %s1045
          %1051 = dma.vmem_to_hbm [thread:$0]  %s1046, 256, %s1044, %s1030, 128, 128, 8
        $region64: #{tpu_custom_call.1} parent=51 // pred_fallthru
          _
      $region52: #{tpu_custom_call.1} parent=5 // pred_fallthru
        _
      %p1052 = scmp.le.s32.totalorder 2, %s19
      // Predicated region
      $region65: #{tpu_custom_call.1} parent=5 // pred_check
        %p1053 = pneg %p1052
      $region66: #{tpu_custom_call.1} parent=5 // pred_check_branch
        %1055 = sbr.rel (%p1053) target = $region68
      $region67: #{tpu_custom_call.1} parent=5 // pred_region
        %s1056 = ssub.s32 %s19, 2
        // Predicated region
        $region69: #{tpu_custom_call.1} parent=67 // pred_check
          %p1057 = pneg %p244
        $region70: #{tpu_custom_call.1} parent=67 // pred_check_branch
          %1059 = sbr.rel (%p1057) target = $region72
        $region71: #{tpu_custom_call.1} parent=67 // pred_region
          %s1060 = sand.u32 %s229, 1
          %s1061 = scalar_lea.sflag [#allocation4], %s1060
          %s1062 = sand.u32 %s229, 1
          %s1063 = smul.addr %s1062, 16
          %s1064 = scalar_lea.vmem [#allocation7], %s1063
          %1065 = dma.done %s1061, 256
        $region72: #{tpu_custom_call.1} parent=67 // pred_fallthru
          _
      $region68: #{tpu_custom_call.1} parent=5 // pred_fallthru
        _
    $region6: #{tpu_custom_call.1} parent=1 // loop_footer
      %s23 = sadd.s32 1, %s19
    $region7: #{tpu_custom_call.1} parent=1 // loop_footer_branch
      %18 = sbr.rel target = $region3
    $region8: #{tpu_custom_call.1} parent=1 // loop_exit
      _
    %1066 = vsyncpa [#allocation3], 1
    %s1067 = scalar_lea.sflag [#allocation3], 1
    %1068 = vsyncpa %s1067, 1
    %1069 = vsyncpa [#allocation6], 1
    %1070 = vsyncpa [#allocation4], 1
    %s1071 = scalar_lea.sflag [#allocation4], 1
    %1072 = vsyncpa %s1071, 1

</llo_original>
